<compile_context>
chip_gen: v7x
topology: tpu7x:2x2x1
jax: 0.10.0
libtpu: 0.0.40
codegen_flags: <defaults>
</compile_context>

<pallas_src>
import functools

import jax
import jax.numpy as jnp
from jax import lax
from jax.experimental import pallas as pl
from jax.experimental.pallas import tpu as pltpu

_SUBLANES = 8      # f32 sublane tile
_LANES = 128       # lane tile


# ---------------------------------------------------------------------------
# Kernels: one edge tile per grid step.
#   inputs : row (1, TILE_E) i32, col (1, TILE_E) i32, pos^T (8, N_pad) f32
#   outputs: cart^T (dim, TILE_E) f32, per-tile max|cart| broadcast to (8, 128)
# ---------------------------------------------------------------------------

def _cart_gather_kernel(row_ref, col_ref, pos_t_ref, cart_ref, tmax_ref):
    sub = pos_t_ref.shape[0]
    tile_e = row_ref.shape[1]
    pos_t = pos_t_ref[...]                                    # (8, N_pad)
    r = jnp.broadcast_to(row_ref[...], (sub, tile_e))         # (8, TILE_E) i32
    c = jnp.broadcast_to(col_ref[...], (sub, tile_e))
    # Lane-axis gather of the edge endpoints: O(E) work, no (N x E) one-hot.
    p_r = jnp.take_along_axis(pos_t, r, axis=1, mode="promise_in_bounds")
    p_c = jnp.take_along_axis(pos_t, c, axis=1, mode="promise_in_bounds")
    cart = p_r - p_c                                          # rows dim..7 are exactly 0
    cart_ref[...] = cart[: cart_ref.shape[0], :]
    # Fused per-tile abs-max (padded rows/edges are 0 -> never affect the max).
    tmax_ref[...] = jnp.broadcast_to(
        jnp.max(jnp.abs(cart), axis=1, keepdims=True), tmax_ref.shape)


def _cart_onehot_kernel(row_ref, col_ref, pos_t_ref, cart_ref, tmax_ref):
    # Fallback only (gather lowering unavailable): one-hot selection + MXU
    # matmul.  O(N*E) VALU work -- acceptable for small graphs only.
    n_pad = pos_t_ref.shape[1]
    tile_e = row_ref.shape[1]
    ids = lax.broadcasted_iota(jnp.int32, (n_pad, tile_e), 0)
    sel = ((ids == row_ref[...]).astype(jnp.float32)
           - (ids == col_ref[...]).astype(jnp.float32))       # (N_pad, TILE_E)
    cart = jnp.dot(pos_t_ref[...], sel, preferred_element_type=jnp.float32)
    cart_ref[...] = cart[: cart_ref.shape[0], :]
    tmax_ref[...] = jnp.broadcast_to(
        jnp.max(jnp.abs(cart), axis=1, keepdims=True), tmax_ref.shape)


# ---------------------------------------------------------------------------
# pallas_call builder (shared by the real pass and the gather probe)
# ---------------------------------------------------------------------------

def _cart_pallas(row, col, pos_t, *, tile_e, kernel, out_rows, vmem_limit):
    e_pad = row.shape[1]
    num_tiles = e_pad // tile_e
    return pl.pallas_call(
        kernel,
        out_shape=(
            jax.ShapeDtypeStruct((out_rows, e_pad), jnp.float32),
            jax.ShapeDtypeStruct((_SUBLANES, _LANES * num_tiles), jnp.float32),
        ),
        grid=(num_tiles,),
        in_specs=[
            pl.BlockSpec((1, tile_e), lambda i: (0, i)),           # row ids (lane-dense)
            pl.BlockSpec((1, tile_e), lambda i: (0, i)),           # col ids (lane-dense)
            pl.BlockSpec(pos_t.shape, lambda i: (0, 0)),           # pos^T, fully resident
        ],
        out_specs=(
            pl.BlockSpec((out_rows, tile_e), lambda i: (0, i)),    # cart^T
            pl.BlockSpec((_SUBLANES, _LANES), lambda i: (0, i)),   # per-tile abs-max
        ),
        compiler_params=pltpu.CompilerParams(
            dimension_semantics=("parallel",),
            vmem_limit_bytes=int(vmem_limit)),
    )(row, col, pos_t)


# ---------------------------------------------------------------------------
# VMEM budgeting / tile sizing (per TPU generation)
# ---------------------------------------------------------------------------

def _vmem_budget_bytes():
    try:
        cap = int(pltpu.get_tpu_info().vmem_capacity_bytes)
    except Exception:                       # introspection unavailable
        cap = 64 * 1024 * 1024              # conservative, v7x-sized default
    # <= half the physical capacity (v7x 64 MiB -> 32 MiB budget, v5e/v6e
    # 128 MiB -> 64 MiB), never more than 96 MiB.
    return max(16 * 1024 * 1024, min(cap // 2, 96 * 1024 * 1024))


def _pick_tile_e(num_edges, n_pad, use_gather, budget_bytes):
    e128 = pl.cdiv(num_edges, _LANES) * _LANES
    # tile_e-independent VMEM: double-buffered resident pos^T block.
    fixed = 2 * _SUBLANES * n_pad * 4
    # Per edge-lane cost: row/col i32 blocks (padded to 8 sublanes, 2 buffers),
    # cart output block (2 buffers), in-kernel f32/i32 temporaries.
    per_lane = (2 * 2 * _SUBLANES * 4) + (2 * _SUBLANES * 4) + (4 * _SUBLANES * 4)
    if not use_gather:
        per_lane += 4 * 4 * n_pad   # one-hot selector + iota/compare temporaries
    avail = int(budget_bytes * 0.75) - fixed
    if avail > per_lane * _LANES:
        tile = (avail // per_lane) // _LANES * _LANES
    else:
        tile = _LANES               # fallback corner (huge N on one-hot path)
    # Don't over-pad tiny edge counts; keep >= 2 tiles when possible so both
    # v7x TensorCores get work; cap where per-step overhead is fully amortized.
    if e128 >= 2 * _LANES:
        tile = min(tile, pl.cdiv(e128 // 2, _LANES) * _LANES)
    else:
        tile = min(tile, e128)
    return int(max(_LANES, min(tile, 16 * 1024)))


# ---------------------------------------------------------------------------
# One-time probe: does the in-kernel gather lower AND index correctly across
# the whole node table on this jax/Mosaic build?
# ---------------------------------------------------------------------------

_GATHER_OK = {}


def _gather_supported(n_pad):
    ok = _GATHER_OK.get(n_pad)
    if ok is None:
        try:
            nodes = jnp.arange(n_pad, dtype=jnp.float32)
            pos_t = jnp.zeros((_SUBLANES, n_pad), jnp.float32)
            pos_t = pos_t.at[0].set(nodes).at[1].set(2.0 * nodes).at[2].set(-3.0 * nodes)
            e = jnp.arange(_LANES, dtype=jnp.int32)
            r = (e * 97 + 13) % n_pad
            c = (e * 53 + 7) % n_pad
            cart, _ = _cart_pallas(r[None, :], c[None, :], pos_t,
                                   tile_e=_LANES, kernel=_cart_gather_kernel,
                                   out_rows=3, vmem_limit=16 * 1024 * 1024)
            ref = pos_t[:3, r] - pos_t[:3, c]
            ok = bool(jnp.all(cart == ref))
        except Exception:
            ok = False
        _GATHER_OK[n_pad] = ok
    return ok


# ---------------------------------------------------------------------------
# Forward
# ---------------------------------------------------------------------------

@functools.partial(jax.jit, static_argnames=("tile_e", "use_gather", "vmem_limit"))
def _cartesian_impl(pos, edge_index, *, tile_e, use_gather, vmem_limit):
    n_nodes, dim = pos.shape
    num_edges = edge_index.shape[1]
    n_pad = pl.cdiv(n_nodes, _LANES) * _LANES
    e_pad = pl.cdiv(num_edges, tile_e) * tile_e

    # Transposed / padded operands.  Padded edges use node 0 for both endpoints,
    # so their cart column is exactly 0 and never affects the global abs-max.
    pos_t = jnp.zeros((_SUBLANES, n_pad), jnp.float32).at[:dim, :n_nodes].set(
        pos.astype(jnp.float32).T)
    row = jnp.zeros((1, e_pad), jnp.int32).at[0, :num_edges].set(
        edge_index[0].astype(jnp.int32))
    col = jnp.zeros((1, e_pad), jnp.int32).at[0, :num_edges].set(
        edge_index[1].astype(jnp.int32))

    kernel = _cart_gather_kernel if use_gather else _cart_onehot_kernel
    cart_t, tile_max = _cart_pallas(row, col, pos_t, tile_e=tile_e, kernel=kernel,
                                    out_rows=dim, vmem_limit=vmem_limit)

    # norm=True, max=None: cart / (2 * max|cart|) + 0.5, folded into the final
    # transpose/cast (fuses under jit -- no second Pallas pass, the (dim, E)
    # intermediate is read exactly once).
    max_val = jnp.max(tile_max)
    return (cart_t[:, :num_edges].T / (2.0 * max_val) + 0.5).astype(pos.dtype)


def cartesian_edge_attr(pos, edge_index):
    """JAX/Pallas equivalent of Cartesian.forward for the edge_attr field."""
    num_edges = edge_index.shape[1]
    if num_edges == 0:
        # mirrors the PyTorch fallback branch (zeros((0, 3)))
        return jnp.zeros((0, 3), dtype=pos.dtype)

    n_nodes, dim = pos.shape
    assert dim <= _SUBLANES, "pos feature dim > 8 not supported"
    n_pad = pl.cdiv(n_nodes, _LANES) * _LANES
    budget = _vmem_budget_bytes()

    use_gather = _gather_supported(n_pad)
    if use_gather:
        tile_e = _pick_tile_e(num_edges, n_pad, True, budget)
        try:
            return _cartesian_impl(pos, edge_index, tile_e=tile_e,
                                   use_gather=True, vmem_limit=budget)
        except Exception:
            _GATHER_OK[n_pad] = False    # safety net: flip to the fallback path
    tile_e = _pick_tile_e(num_edges, n_pad, False, budget)
    return _cartesian_impl(pos, edge_index, tile_e=tile_e,
                           use_gather=False, vmem_limit=budget)


def _reference(pos, edge_index):
    row, col = edge_index[0], edge_index[1]
    cart = pos[row] - pos[col]
    if cart.size == 0:
        return jnp.zeros((0, 3), dtype=pos.dtype)
    m = jnp.max(jnp.abs(cart))
    return cart / (2.0 * m) + 0.5


if __name__ == "__main__":
    key = jax.random.PRNGKey(0)
    k_pos, k_row, k_col = jax.random.split(key, 3)

    N, D, E = 64, 3, 600          # E pads to 2 edge tiles -> exercises the grid
    pos = jax.random.normal(k_pos, (N, D), dtype=jnp.float32)
    row = jax.random.randint(k_row, (E,), 0, N, dtype=jnp.int32)
    col = jax.random.randint(k_col, (E,), 0, N, dtype=jnp.int32)
    edge_index = jnp.stack([row, col], axis=0)          # [2, E]

    edge_attr = jax.block_until_ready(cartesian_edge_attr(pos, edge_index))

    ref = _reference(pos, edge_index)
    assert edge_attr.shape == (E, D), edge_attr.shape
    assert jnp.allclose(edge_attr, ref, atol=1e-5, rtol=1e-5), (
        float(jnp.max(jnp.abs(edge_attr - ref))))

    # also exercise the empty-edge branch
    empty_attr = cartesian_edge_attr(pos, jnp.zeros((2, 0), dtype=jnp.int32))
    assert empty_attr.shape == (0, 3)

    print("KERNEL_OK")
</pallas_src>

<mosaic_0001>
module attributes {stable_mosaic.version = 11 : i64} {
  func.func @_cart_gather_kernel(%arg0: i32, %arg1: memref<1x128xi32, #tpu.memory_space<vmem>>, %arg2: memref<1x128xi32, #tpu.memory_space<vmem>>, %arg3: memref<8x128xf32, #tpu.memory_space<vmem>>, %arg4: memref<3x128xf32, #tpu.memory_space<vmem>>, %arg5: memref<8x128xf32, #tpu.memory_space<vmem>>) attributes {dimension_semantics = [#tpu.dimension_semantics<parallel>], iteration_bounds = array<i64: 1>, scalar_prefetch = 0 : i64, scratch_operands = 0 : i64, tpu.core_type = #tpu.core_type<tc>, window_params = [{transform_indices = @transform_0, window_bounds = array<i64: 1, 128>}, {transform_indices = @transform_1, window_bounds = array<i64: 1, 128>}, {pipeline_mode = #tpu.pipeline_mode<synchronous>, transform_indices = @transform_2, window_bounds = array<i64: 8, 128>}, {transform_indices = @transform_3, window_bounds = array<i64: 3, 128>}, {transform_indices = @transform_4, window_bounds = array<i64: 8, 128>}]} {
    %c0 = arith.constant 0 : index
    %c0_0 = arith.constant 0 : index
    %0 = vector.load %arg3[%c0, %c0_0] : memref<8x128xf32, #tpu.memory_space<vmem>>, vector<8x128xf32>
    %c0_1 = arith.constant 0 : index
    %c0_2 = arith.constant 0 : index
    %1 = vector.load %arg1[%c0_1, %c0_2] : memref<1x128xi32, #tpu.memory_space<vmem>>, vector<1x128xi32>
    %2 = vector.shape_cast %1 : vector<1x128xi32> to vector<1x128xi32>
    %3 = vector.broadcast %2 : vector<1x128xi32> to vector<8x128xi32>
    %c0_3 = arith.constant 0 : index
    %c0_4 = arith.constant 0 : index
    %4 = vector.load %arg2[%c0_3, %c0_4] : memref<1x128xi32, #tpu.memory_space<vmem>>, vector<1x128xi32>
    %5 = vector.shape_cast %4 : vector<1x128xi32> to vector<1x128xi32>
    %6 = vector.broadcast %5 : vector<1x128xi32> to vector<8x128xi32>
    %7 = vector.shape_cast %3 : vector<8x128xi32> to vector<8x128x1xi32>
    %8 = vector.shape_cast %7 : vector<8x128x1xi32> to vector<8x128xi32>
    %9 = tpu.dynamic_gather %0[%8] in [1] : vector<8x128xf32>, vector<8x128xi32> -> vector<8x128xf32>
    %10 = vector.shape_cast %6 : vector<8x128xi32> to vector<8x128x1xi32>
    %11 = vector.shape_cast %10 : vector<8x128x1xi32> to vector<8x128xi32>
    %12 = tpu.dynamic_gather %0[%11] in [1] : vector<8x128xf32>, vector<8x128xi32> -> vector<8x128xf32>
    %13 = arith.subf %9, %12 : vector<8x128xf32>
    %14 = vector.extract_strided_slice %13 {offsets = [0, 0], sizes = [3, 128], strides = [1, 1]} : vector<8x128xf32> to vector<3x128xf32>
    %c0_5 = arith.constant 0 : index
    %c0_6 = arith.constant 0 : index
    %15 = vector.load %arg4[%c0_5, %c0_6] : memref<3x128xf32, #tpu.memory_space<vmem>>, vector<3x128xf32>
    tpu.vector_store %arg4[%c0_5, %c0_6], %14 {strides = array<i32>} : memref<3x128xf32, #tpu.memory_space<vmem>>, vector<3x128xf32>,
    %16 = math.absf %13 : vector<8x128xf32>
    %cst = arith.constant dense<0xFF800000> : vector<8xf32>
    %17 = vector.multi_reduction <maximumf>, %16, %cst [1] : vector<8x128xf32> to vector<8xf32>
    %18 = vector.shape_cast %17 : vector<8xf32> to vector<8x1xf32>
    %19 = vector.shape_cast %18 : vector<8x1xf32> to vector<8x1xf32>
    %20 = vector.broadcast %19 : vector<8x1xf32> to vector<8x128xf32>
    %c0_7 = arith.constant 0 : index
    %c0_8 = arith.constant 0 : index
    %21 = vector.load %arg5[%c0_7, %c0_8] : memref<8x128xf32, #tpu.memory_space<vmem>>, vector<8x128xf32>
    tpu.vector_store %arg5[%c0_7, %c0_8], %20 {strides = array<i32>} : memref<8x128xf32, #tpu.memory_space<vmem>>, vector<8x128xf32>,
    return
  }
  func.func @transform_0(%arg0: i32) -> (i32, i32) {
    %c0_i32 = arith.constant 0 : i32
    %c0_i32_0 = arith.constant 0 : i32
    return %c0_i32, %arg0 : i32, i32
  }
  func.func @transform_1(%arg0: i32) -> (i32, i32) {
    %c0_i32 = arith.constant 0 : i32
    %c0_i32_0 = arith.constant 0 : i32
    return %c0_i32, %arg0 : i32, i32
  }
  func.func @transform_2(%arg0: i32) -> (i32, i32) {
    %c0_i32 = arith.constant 0 : i32
    %c0_i32_0 = arith.constant 0 : i32
    %c0_i32_1 = arith.constant 0 : i32
    return %c0_i32, %c0_i32_0 : i32, i32
  }
  func.func @transform_3(%arg0: i32) -> (i32, i32) {
    %c0_i32 = arith.constant 0 : i32
    %c0_i32_0 = arith.constant 0 : i32
    return %c0_i32, %arg0 : i32, i32
  }
  func.func @transform_4(%arg0: i32) -> (i32, i32) {
    %c0_i32 = arith.constant 0 : i32
    %c0_i32_0 = arith.constant 0 : i32
    return %c0_i32, %arg0 : i32, i32
  }
}

module attributes {stable_mosaic.version = 11 : i64} {
  func.func @_cart_onehot_kernel(%arg0: i32, %arg1: memref<1x384xi32, #tpu.memory_space<vmem>>, %arg2: memref<1x384xi32, #tpu.memory_space<vmem>>, %arg3: memref<8x128xf32, #tpu.memory_space<vmem>>, %arg4: memref<3x384xf32, #tpu.memory_space<vmem>>, %arg5: memref<8x128xf32, #tpu.memory_space<vmem>>) attributes {dimension_semantics = [#tpu.dimension_semantics<parallel>], iteration_bounds = array<i64: 2>, scalar_prefetch = 0 : i64, scratch_operands = 0 : i64, tpu.core_type = #tpu.core_type<tc>, window_params = [{transform_indices = @transform_0, window_bounds = array<i64: 1, 384>}, {transform_indices = @transform_1, window_bounds = array<i64: 1, 384>}, {pipeline_mode = #tpu.pipeline_mode<synchronous>, transform_indices = @transform_2, window_bounds = array<i64: 8, 128>}, {transform_indices = @transform_3, window_bounds = array<i64: 3, 384>}, {transform_indices = @transform_4, window_bounds = array<i64: 8, 128>}]} {
    %0 = tpu.iota {dimensions = array<i32: 0>} : vector<128x384xi32>
    %c0 = arith.constant 0 : index
    %c0_0 = arith.constant 0 : index
    %1 = vector.load %arg1[%c0, %c0_0] : memref<1x384xi32, #tpu.memory_space<vmem>>, vector<1x384xi32>
    %2 = vector.broadcast %1 : vector<1x384xi32> to vector<128x384xi32>
    %3 = arith.cmpi eq, %0, %2 : vector<128x384xi32>
    %4 = arith.extui %3 : vector<128x384xi1> to vector<128x384xi32>
    %5 = arith.sitofp %4 : vector<128x384xi32> to vector<128x384xf32>
    %c0_1 = arith.constant 0 : index
    %c0_2 = arith.constant 0 : index
    %6 = vector.load %arg2[%c0_1, %c0_2] : memref<1x384xi32, #tpu.memory_space<vmem>>, vector<1x384xi32>
    %7 = vector.broadcast %6 : vector<1x384xi32> to vector<128x384xi32>
    %8 = arith.cmpi eq, %0, %7 : vector<128x384xi32>
    %9 = arith.extui %8 : vector<128x384xi1> to vector<128x384xi32>
    %10 = arith.sitofp %9 : vector<128x384xi32> to vector<128x384xf32>
    %11 = arith.subf %5, %10 : vector<128x384xf32>
    %c0_3 = arith.constant 0 : index
    %c0_4 = arith.constant 0 : index
    %12 = vector.load %arg3[%c0_3, %c0_4] : memref<8x128xf32, #tpu.memory_space<vmem>>, vector<8x128xf32>
    %cst = arith.constant dense<0.000000e+00> : vector<8x384xf32>
    %13 = tpu.matmul %12, %11, %cst {dimension_numbers = #tpu.dot_dimension_numbers<[1], [0], [0], [1], [0, 0, 1, 1], [], []>} : vector<8x128xf32>, vector<128x384xf32>, vector<8x384xf32> -> vector<8x384xf32>
    %14 = vector.extract_strided_slice %13 {offsets = [0, 0], sizes = [3, 384], strides = [1, 1]} : vector<8x384xf32> to vector<3x384xf32>
    %c0_5 = arith.constant 0 : index
    %c0_6 = arith.constant 0 : index
    %15 = vector.load %arg4[%c0_5, %c0_6] : memref<3x384xf32, #tpu.memory_space<vmem>>, vector<3x384xf32>
    tpu.vector_store %arg4[%c0_5, %c0_6], %14 {strides = array<i32>} : memref<3x384xf32, #tpu.memory_space<vmem>>, vector<3x384xf32>,
    %16 = math.absf %13 : vector<8x384xf32>
    %cst_7 = arith.constant dense<0xFF800000> : vector<8xf32>
    %17 = vector.multi_reduction <maximumf>, %16, %cst_7 [1] : vector<8x384xf32> to vector<8xf32>
    %18 = vector.shape_cast %17 : vector<8xf32> to vector<8x1xf32>
    %19 = vector.shape_cast %18 : vector<8x1xf32> to vector<8x1xf32>
    %20 = vector.broadcast %19 : vector<8x1xf32> to vector<8x128xf32>
    %c0_8 = arith.constant 0 : index
    %c0_9 = arith.constant 0 : index
    %21 = vector.load %arg5[%c0_8, %c0_9] : memref<8x128xf32, #tpu.memory_space<vmem>>, vector<8x128xf32>
    tpu.vector_store %arg5[%c0_8, %c0_9], %20 {strides = array<i32>} : memref<8x128xf32, #tpu.memory_space<vmem>>, vector<8x128xf32>,
    return
  }
  func.func @transform_0(%arg0: i32) -> (i32, i32) {
    %c0_i32 = arith.constant 0 : i32
    %c0_i32_0 = arith.constant 0 : i32
    return %c0_i32, %arg0 : i32, i32
  }
  func.func @transform_1(%arg0: i32) -> (i32, i32) {
    %c0_i32 = arith.constant 0 : i32
    %c0_i32_0 = arith.constant 0 : i32
    return %c0_i32, %arg0 : i32, i32
  }
  func.func @transform_2(%arg0: i32) -> (i32, i32) {
    %c0_i32 = arith.constant 0 : i32
    %c0_i32_0 = arith.constant 0 : i32
    %c0_i32_1 = arith.constant 0 : i32
    return %c0_i32, %c0_i32_0 : i32, i32
  }
  func.func @transform_3(%arg0: i32) -> (i32, i32) {
    %c0_i32 = arith.constant 0 : i32
    %c0_i32_0 = arith.constant 0 : i32
    return %c0_i32, %arg0 : i32, i32
  }
  func.func @transform_4(%arg0: i32) -> (i32, i32) {
    %c0_i32 = arith.constant 0 : i32
    %c0_i32_0 = arith.constant 0 : i32
    return %c0_i32, %arg0 : i32, i32
  }
}

</mosaic_0001>

<llo_original>
// kernel: tpu_custom_call.1
$region0: #{tpu_custom_call.1}
  #allocation0 [shape = 'u32[]', space=smem, size = 0x4, offset = 0x4, fixed_abs, tag = 'smem constant byte address 0x4 - core index']
  #allocation1 [shape = 'u32[144,128]{1,0:T(1,128)}', space=vmem, size = 0x12000, scoped, tag = 'internal scratch']
  %s0 = inlined_call_operand.hbm [shape: s32[1,128], index: 0, kind: input, shape index: {}]
  %s1 = inlined_call_operand.vmem [shape: s32[1,128], index: 1, kind: input, shape index: {}]
  %s2 = inlined_call_operand.hbm [shape: f32[8,128], index: 2, kind: input, shape index: {}]
  %s3 = inlined_call_operand.hbm [shape: f32[3,128], index: 3, kind: output, shape index: {0}]
  %s4 = inlined_call_operand.hbm [shape: f32[8,128], index: 4, kind: output, shape index: {1}]
  %5 = xla_tuple %s3, %s4
  %s6 = sld [smem:[#allocation0]]
  $region38: #{tpu_custom_call.1} parent=0
    _
  %s8 = ssub.s32 1, %s6
  %s9 = scalar_select 0, %s8, %s6
  $region1: #{tpu_custom_call.1} parent=0
    #allocation2 [shape = 'u8[512]{0}', space=vmem, size = 0x400, scoped, tag = 'input window, operand 0, single buffered']
    #allocation3 [shape = 's32[1]{0}', space=sflag, size = 0x4, scoped, tag = 'scoped memory for tpu_custom_call.1']
    #allocation4 [shape = 's32[1]{0}', space=sflag, size = 0x4, scoped, tag = 'scoped memory for tpu_custom_call.1']
    #allocation5 [shape = 'u8[4096]{0}', space=vmem, size = 0x1000, scoped, tag = 'input window, operand 2, single buffered']
    #allocation6 [shape = 's32[1]{0}', space=sflag, size = 0x4, scoped, tag = 'scoped memory for tpu_custom_call.1']
    #allocation7 [shape = 'u8[2048]{0}', space=vmem, size = 0x800, scoped, tag = 'output window, operand 0, single buffered']
    #allocation8 [shape = 'u8[4096]{0}', space=vmem, size = 0x1000, scoped, tag = 'output window, operand 1, single buffered']
    #allocation9 [shape = 's32[1]{0}', space=sflag, size = 0x4, scoped, tag = 'scoped memory for tpu_custom_call.1']
    %10 = vsyncpa [#allocation3], 0
    %11 = vsyncpa [#allocation6], 0
    %12 = vsyncpa [#allocation4], 0
    %13 = vsyncpa [#allocation9], 0
    // Predicated region
    $region2: #{tpu_custom_call.1} parent=1 // pred_check
      _
    $region3: #{tpu_custom_call.1} parent=1 // pred_check_branch
      %15 = sbr.rel (0) target = $region5
    $region4: #{tpu_custom_call.1} parent=1 // pred_region
      %s17 = ssub.s32 16, 16
      %18 = vsyncadd [#allocation3], %s17
      %s20 = sshll.u32 [#allocation2], 4
      %s21 = int_to_ptr.vmem [resolvable:$true] %s20
      %23 = dma.hbm_to_vmem [thread:$0]  %s0, 16, %s21, [#allocation3]
    $region5: #{tpu_custom_call.1} parent=1 // pred_fallthru
      _
    // Predicated region
    $region6: #{tpu_custom_call.1} parent=1 // pred_check
      _
    $region7: #{tpu_custom_call.1} parent=1 // pred_check_branch
      %25 = sbr.rel (0) target = $region9
    $region8: #{tpu_custom_call.1} parent=1 // pred_region
      _
    $region9: #{tpu_custom_call.1} parent=1 // pred_fallthru
      _
    // Predicated region
    $region10: #{tpu_custom_call.1} parent=1 // pred_check
      _
    $region11: #{tpu_custom_call.1} parent=1 // pred_check_branch
      %27 = sbr.rel (0) target = $region13
    $region12: #{tpu_custom_call.1} parent=1 // pred_region
      %s29 = ssub.s32 128, 128
      %30 = vsyncadd [#allocation6], %s29
      %s32 = sshll.u32 [#allocation5], 4
      %s33 = int_to_ptr.vmem [resolvable:$true] %s32
      %35 = dma.hbm_to_vmem [thread:$0]  %s2, 128, %s33, [#allocation6]
    $region13: #{tpu_custom_call.1} parent=1 // pred_fallthru
      _
    // Predicated region
    $region14: #{tpu_custom_call.1} parent=1 // pred_check
      _
    $region15: #{tpu_custom_call.1} parent=1 // pred_check_branch
      %37 = sbr.rel (0) target = $region17
    $region16: #{tpu_custom_call.1} parent=1 // pred_region
      %38 = dma.done [#allocation3], 16
    $region17: #{tpu_custom_call.1} parent=1 // pred_fallthru
      _
    // Predicated region
    $region18: #{tpu_custom_call.1} parent=1 // pred_check
      _
    $region19: #{tpu_custom_call.1} parent=1 // pred_check_branch
      %40 = sbr.rel (0) target = $region21
    $region20: #{tpu_custom_call.1} parent=1 // pred_region
      %41 = dma.done [#allocation6], 128
    $region21: #{tpu_custom_call.1} parent=1 // pred_fallthru
      _
    %v42 = vld [vmem:[#allocation5] sm:$0xff]
    %v43 = vld [vmem:[#allocation2] sm:$0x1]
    %v44 = vlaneseq
    %v45 = vshrl.u32 %v44, 7
    %v46 = vsub.s32 0, %v45
    %v47 = vrot.slane %v43, %v46
    %v48 = vld [vmem:[%s1] sm:$0x1]
    %v49 = vlaneseq
    %v50 = vshrl.u32 %v49, 7
    %v51 = vsub.s32 0, %v50
    %v52 = vrot.slane %v48, %v51
    %53 = vset.pattern.permute.xlu0 %v47
    %54 = vperm.xlu0 %53, %v42
    %v55 = vpop.permute.xlu0 %54
    %56 = vset.pattern.permute.xlu0 %v52
    %57 = vperm.xlu0 %56, %v42
    %v58 = vpop.permute.xlu0 %57
    %v59 = vsub.f32 %v55, %v58
    %60 = vst [vmem:[#allocation7] sm:$0x7] %v59
    %v61 = vand.u32 2147483647, %v59
    %62 = vmax.xlane.f32.xlu0 %v61
    %v63 = vpop.xlane.xlu0 %62
    %64 = vst [vmem:[#allocation8] sm:$0xff] %v63
    // Predicated region
    $region22: #{tpu_custom_call.1} parent=1 // pred_check
      _
    $region23: #{tpu_custom_call.1} parent=1 // pred_check_branch
      %66 = sbr.rel (0) target = $region25
    $region24: #{tpu_custom_call.1} parent=1 // pred_region
      %s68 = ssub.s32 64, 64
      %69 = vsyncadd [#allocation4], %s68
      %s71 = sshll.u32 [#allocation7], 4
      %s72 = int_to_ptr.vmem [resolvable:$true] %s71
      %74 = dma.vmem_to_hbm [thread:$0]  %s72, 64, %s3, [#allocation4]
    $region25: #{tpu_custom_call.1} parent=1 // pred_fallthru
      _
    // Predicated region
    $region26: #{tpu_custom_call.1} parent=1 // pred_check
      _
    $region27: #{tpu_custom_call.1} parent=1 // pred_check_branch
      %76 = sbr.rel (0) target = $region29
    $region28: #{tpu_custom_call.1} parent=1 // pred_region
      %s78 = ssub.s32 128, 128
      %79 = vsyncadd [#allocation9], %s78
      %s81 = sshll.u32 [#allocation8], 4
      %s82 = int_to_ptr.vmem [resolvable:$true] %s81
      %84 = dma.vmem_to_hbm [thread:$0]  %s82, 128, %s4, [#allocation9]
    $region29: #{tpu_custom_call.1} parent=1 // pred_fallthru
      _
    // Predicated region
    $region30: #{tpu_custom_call.1} parent=1 // pred_check
      _
    $region31: #{tpu_custom_call.1} parent=1 // pred_check_branch
      %86 = sbr.rel (0) target = $region33
    $region32: #{tpu_custom_call.1} parent=1 // pred_region
      %87 = dma.done [#allocation4], 64
    $region33: #{tpu_custom_call.1} parent=1 // pred_fallthru
      _
    // Predicated region
    $region34: #{tpu_custom_call.1} parent=1 // pred_check
      _
    $region35: #{tpu_custom_call.1} parent=1 // pred_check_branch
      %89 = sbr.rel (0) target = $region37
    $region36: #{tpu_custom_call.1} parent=1 // pred_region
      %90 = dma.done [#allocation9], 128
    $region37: #{tpu_custom_call.1} parent=1 // pred_fallthru
      _
    %91 = vsyncpa [#allocation3], 1
    %92 = vsyncpa [#allocation6], 1
    %93 = vsyncpa [#allocation4], 1
    %94 = vsyncpa [#allocation9], 1

// kernel: _cartesian_impl.1
$region0: #{_cartesian_impl.1}
  #allocation0 [shape = 'u32[]', space=smem, size = 0x4, offset = 0x4, fixed_abs, tag = 'smem constant byte address 0x4 - core index']
  #allocation1 [shape = 'u32[144,128]{1,0:T(1,128)}', space=vmem, size = 0x12000, scoped, tag = 'internal scratch']
  %s0 = inlined_call_operand.vmem [shape: s32[1,768], index: 0, kind: input, shape index: {}]
  %s1 = inlined_call_operand.vmem [shape: s32[1,768], index: 1, kind: input, shape index: {}]
  %s2 = inlined_call_operand.vmem [shape: f32[8,128], index: 2, kind: input, shape index: {}]
  %s3 = inlined_call_operand.vmem [shape: f32[3,768], index: 3, kind: output, shape index: {0}]
  %s4 = inlined_call_operand.vmem [shape: f32[8,256], index: 4, kind: output, shape index: {1}]
  %5 = xla_tuple %s3, %s4
  %s6 = sld [smem:[#allocation0]]
  $region53: #{_cartesian_impl.1} parent=0
    _
  %s8 = ssub.s32 1, %s6
  %s9 = scalar_select 0, %s8, %s6
  loop: start=0, step=1, limit=4
  $region2: #{_cartesian_impl.1} parent=0 // loop_pre_header
    _
  $region3: #{_cartesian_impl.1} parent=0 // loop_header
    %s11 = sphi 0, %s15
    %p12 = scmp.ge.s32.totalorder %s11, 4
    %s21 = sphi 0, %s23
    %s24 = sphi 0, %s21
    %s25 = sphi 0, %s24
    %s41 = sphi 0, %s25
    %s47 = sphi 0, %s49
    %s50 = sphi 0, %s47
    %s51 = sphi 0, %s50
    %s67 = sphi 0, %s51
    %s71 = sphi 0, %s71
    %s73 = sphi 0, %s71
    %s74 = sphi 0, %s73
    %s88 = sphi 0, %s74
    %s94 = sphi 0, %s96
    %s97 = sphi 0, %s94
    %s98 = sphi 0, %s97
    %s114 = sphi 0, %s98
    %s120 = sphi 0, %s122
    %s123 = sphi 0, %s120
    %s124 = sphi 0, %s123
    %s140 = sphi 0, %s124
  $region4: #{_cartesian_impl.1} parent=0 // loop_header_branch
    %14 = sbr.rel (%p12) target = $region8
  $region5: #{_cartesian_impl.1} parent=0 // loop_body
    %s16 = ssub.s32 %s11, 1
    %s17 = ssub.s32 %s11, 2
    %s18 = sadd.s32 %s11, 1
    %s19 = ssub.s32 %s11, %s18
    %p20 = scmp.eq.s32.totalorder %s19, 0
    %s22 = sadd.s32 %s21, 1
    %s23 = scalar_select %p20, %s21, %s22
    %p26 = pneg %p20
    %p27 = scmp.eq.s32.totalorder %s11, 1
    %p28 = por %p26, %p27
    %p29 = scmp.ne.s32.totalorder %s21, %s24
    %p30 = scmp.eq.s32.totalorder %s11, 0
    %p31 = por %p29, %p30
    %p32 = scmp.ne.s32.totalorder %s21, %s24
    %p33 = scmp.eq.s32.totalorder %s16, 1
    %p34 = por %p32, %p33
    %p35 = scmp.ne.s32.totalorder %s24, %s25
    %p36 = scmp.eq.s32.totalorder %s16, 0
    %p37 = por %p35, %p36
    %p38 = scmp.ne.s32.totalorder %s24, %s25
    %p39 = scmp.eq.s32.totalorder %s17, 1
    %p40 = por %p38, %p39
    %p42 = scmp.ne.s32.totalorder %s25, %s41
    %p43 = scmp.eq.s32.totalorder %s17, 0
    %p44 = por %p42, %p43
    %s45 = ssub.s32 %s11, %s18
    %p46 = scmp.eq.s32.totalorder %s45, 0
    %s48 = sadd.s32 %s47, 1
    %s49 = scalar_select %p46, %s47, %s48
    %p52 = pneg %p46
    %p53 = scmp.eq.s32.totalorder %s11, 1
    %p54 = por %p52, %p53
    %p55 = scmp.ne.s32.totalorder %s47, %s50
    %p56 = scmp.eq.s32.totalorder %s11, 0
    %p57 = por %p55, %p56
    %p58 = scmp.ne.s32.totalorder %s47, %s50
    %p59 = scmp.eq.s32.totalorder %s16, 1
    %p60 = por %p58, %p59
    %p61 = scmp.ne.s32.totalorder %s50, %s51
    %p62 = scmp.eq.s32.totalorder %s16, 0
    %p63 = por %p61, %p62
    %p64 = scmp.ne.s32.totalorder %s50, %s51
    %p65 = scmp.eq.s32.totalorder %s17, 1
    %p66 = por %p64, %p65
    %p68 = scmp.ne.s32.totalorder %s51, %s67
    %p69 = scmp.eq.s32.totalorder %s17, 0
    %p70 = por %p68, %p69
    %s72 = sadd.s32 %s71, 1
    %p75 = scmp.eq.s32.totalorder %s11, 1
    %p76 = scmp.ne.s32.totalorder %s71, %s73
    %p77 = scmp.eq.s32.totalorder %s11, 0
    %p78 = por %p76, %p77
    %p79 = scmp.ne.s32.totalorder %s71, %s73
    %p80 = scmp.eq.s32.totalorder %s16, 1
    %p81 = por %p79, %p80
    %p82 = scmp.ne.s32.totalorder %s73, %s74
    %p83 = scmp.eq.s32.totalorder %s16, 0
    %p84 = por %p82, %p83
    %p85 = scmp.ne.s32.totalorder %s73, %s74
    %p86 = scmp.eq.s32.totalorder %s17, 1
    %p87 = por %p85, %p86
    %p89 = scmp.ne.s32.totalorder %s74, %s88
    %p90 = scmp.eq.s32.totalorder %s17, 0
    %p91 = por %p89, %p90
    %s92 = ssub.s32 %s11, %s18
    %p93 = scmp.eq.s32.totalorder %s92, 0
    %s95 = sadd.s32 %s94, 1
    %s96 = scalar_select %p93, %s94, %s95
    %p99 = pneg %p93
    %p100 = scmp.eq.s32.totalorder %s11, 1
    %p101 = por %p99, %p100
    %p102 = scmp.ne.s32.totalorder %s94, %s97
    %p103 = scmp.eq.s32.totalorder %s11, 0
    %p104 = por %p102, %p103
    %p105 = scmp.ne.s32.totalorder %s94, %s97
    %p106 = scmp.eq.s32.totalorder %s16, 1
    %p107 = por %p105, %p106
    %p108 = scmp.ne.s32.totalorder %s97, %s98
    %p109 = scmp.eq.s32.totalorder %s16, 0
    %p110 = por %p108, %p109
    %p111 = scmp.ne.s32.totalorder %s97, %s98
    %p112 = scmp.eq.s32.totalorder %s17, 1
    %p113 = por %p111, %p112
    %p115 = scmp.ne.s32.totalorder %s98, %s114
    %p116 = scmp.eq.s32.totalorder %s17, 0
    %p117 = por %p115, %p116
    %s118 = ssub.s32 %s11, %s18
    %p119 = scmp.eq.s32.totalorder %s118, 0
    %s121 = sadd.s32 %s120, 1
    %s122 = scalar_select %p119, %s120, %s121
    %p125 = pneg %p119
    %p126 = scmp.eq.s32.totalorder %s11, 1
    %p127 = por %p125, %p126
    %p128 = scmp.ne.s32.totalorder %s120, %s123
    %p129 = scmp.eq.s32.totalorder %s11, 0
    %p130 = por %p128, %p129
    %p131 = scmp.ne.s32.totalorder %s120, %s123
    %p132 = scmp.eq.s32.totalorder %s16, 1
    %p133 = por %p131, %p132
    %p134 = scmp.ne.s32.totalorder %s123, %s124
    %p135 = scmp.eq.s32.totalorder %s16, 0
    %p136 = por %p134, %p135
    %p137 = scmp.ne.s32.totalorder %s123, %s124
    %p138 = scmp.eq.s32.totalorder %s17, 1
    %p139 = por %p137, %p138
    %p141 = scmp.ne.s32.totalorder %s124, %s140
    %p142 = scmp.eq.s32.totalorder %s17, 0
    %p143 = por %p141, %p142
    %p144 = scmp.le.s32.totalorder 1, %s11
    %p145 = scmp.lt.s32.totalorder %s11, 3
    %p146 = pnand %p144, %p145
    %p147 = pneg %p146
    // Predicated region
    $region9: #{_cartesian_impl.1} parent=5 // pred_check
      _
    $region10: #{_cartesian_impl.1} parent=5 // pred_check_branch
      %149 = sbr.rel (%p146) target = $region12
    $region11: #{_cartesian_impl.1} parent=5 // pred_region
      %s150 = ssub.s32 %s11, 1
      // Predicated region
      $region13: #{_cartesian_impl.1} parent=11 // pred_check
        %p151 = pneg %p84
      $region14: #{_cartesian_impl.1} parent=11 // pred_check_branch
        %153 = sbr.rel (%p151) target = $region16
      $region15: #{_cartesian_impl.1} parent=11 // pred_region
        _
      $region16: #{_cartesian_impl.1} parent=11 // pred_fallthru
        _
    $region12: #{_cartesian_impl.1} parent=5 // pred_fallthru
      _
    %p154 = scmp.lt.s32.totalorder %s11, 2
    // Predicated region
    $region17: #{_cartesian_impl.1} parent=5 // pred_check
      %p155 = pneg %p154
    $region18: #{_cartesian_impl.1} parent=5 // pred_check_branch
      %157 = sbr.rel (%p155) target = $region20
    $region19: #{_cartesian_impl.1} parent=5 // pred_region
      // Predicated region
      $region21: #{_cartesian_impl.1} parent=19 // pred_check
        %p158 = pneg %p31
      $region22: #{_cartesian_impl.1} parent=19 // pred_check_branch
        %160 = sbr.rel (%p158) target = $region24
      $region23: #{_cartesian_impl.1} parent=19 // pred_region
        %s161 = smul.u32 3, %s11
        %p162 = scmp.lt.s32.totalorder %s161, 5
        %s163 = scalar_select %p162, %s161, 5
        %s164 = scalar_lea.vmem %s0, %s163
        %s165 = smul.u32 3, %s11
      $region24: #{_cartesian_impl.1} parent=19 // pred_fallthru
        _
      // Predicated region
      $region25: #{_cartesian_impl.1} parent=19 // pred_check
        %p166 = pneg %p57
      $region26: #{_cartesian_impl.1} parent=19 // pred_check_branch
        %168 = sbr.rel (%p166) target = $region28
      $region27: #{_cartesian_impl.1} parent=19 // pred_region
        %s169 = smul.u32 3, %s11
        %p170 = scmp.lt.s32.totalorder %s169, 5
        %s171 = scalar_select %p170, %s169, 5
        %s172 = scalar_lea.vmem %s1, %s171
        %s173 = smul.u32 3, %s11
      $region28: #{_cartesian_impl.1} parent=19 // pred_fallthru
        _
    $region20: #{_cartesian_impl.1} parent=5 // pred_fallthru
      _
    %p174 = scmp.le.s32.totalorder 1, %s11
    %p175 = scmp.lt.s32.totalorder %s11, 3
    %p176 = pnand %p174, %p175
    %p177 = pneg %p176
    // Predicated region
    $region29: #{_cartesian_impl.1} parent=5 // pred_check
      _
    $region30: #{_cartesian_impl.1} parent=5 // pred_check_branch
      %179 = sbr.rel (%p176) target = $region32
    $region31: #{_cartesian_impl.1} parent=5 // pred_region
      %s180 = ssub.s32 %s11, 1
      %s181 = smul.u32 3, %s16
      %p182 = scmp.lt.s32.totalorder %s181, 5
      %s183 = scalar_select %p182, %s181, 5
      %s184 = scalar_lea.vmem %s0, %s183
      %p185 = pneg %p37
      %p186 = pneg %p34
      %s187 = smul.u32 3, %s16
      %p188 = scmp.lt.s32.totalorder %s187, 5
      %s189 = scalar_select %p188, %s187, 5
      %s190 = scalar_lea.vmem %s1, %s189
      %p191 = pneg %p63
      %p192 = pneg %p60
      %p193 = pneg %p84
      %p194 = pneg %p81
      %p195 = pneg %p110
      %p196 = pneg %p107
      %s197 = smul.u32 3, %s16
      %p198 = scmp.lt.s32.totalorder %s197, 5
      %s199 = scalar_select %p198, %s197, 5
      %s200 = smul.addr %s199, 4
      %s201 = scalar_lea.vmem %s3, %s200
      %p202 = pneg %p136
      %p203 = pneg %p133
      %p204 = scmp.lt.s32.totalorder %s16, 1
      %s205 = scalar_select %p204, %s16, 1
      %s206 = smul.addr %s205, 8
      %s207 = scalar_lea.vmem %s4, %s206
      %s208 = smul.u32 3, %s16
      %p209 = scmp.lt.s32.totalorder %s208, 5
      %s210 = scalar_select %p209, %s208, 5
      %s211 = scalar_lea.vmem %s0, %s210
      %s212 = smul.u32 3, %s16
      %s213 = smul.u32 3, %s16
      %p214 = scmp.lt.s32.totalorder %s213, 5
      %s215 = scalar_select %p214, %s213, 5
      %s216 = scalar_lea.vmem %s1, %s215
      %s217 = smul.u32 3, %s16
      %s218 = smul.u32 3, %s16
      %p219 = scmp.lt.s32.totalorder %s218, 5
      %s220 = scalar_select %p219, %s218, 5
      %s221 = smul.addr %s220, 4
      %s222 = scalar_lea.vmem %s3, %s221
      %s223 = smul.u32 3, %s16
      %p224 = scmp.lt.s32.totalorder %s16, 1
      %s225 = scalar_select %p224, %s16, 1
      %s226 = smul.addr %s225, 8
      %s227 = scalar_lea.vmem %s4, %s226
      %v228 = vlaneseq
      %v229 = vshrl.u32 %v228, 7
      %v230 = vadd.s32 %v229, 8
      %v231 = vadd.s32 %v229, 16
      %v232 = vadd.s32 %v229, 24
      %v233 = vadd.s32 %v229, 32
      %v234 = vadd.s32 %v229, 40
      %v235 = vadd.s32 %v229, 48
      %v236 = vadd.s32 %v229, 56
      %v237 = vadd.s32 %v229, 64
      %v238 = vadd.s32 %v229, 72
      %v239 = vadd.s32 %v229, 80
      %v240 = vadd.s32 %v229, 88
      %v241 = vadd.s32 %v229, 96
      %v242 = vadd.s32 %v229, 104
      %v243 = vadd.s32 %v229, 112
      %v244 = vadd.s32 %v229, 120
      %v245 = vld [vmem:[%s211] sm:$0x7]
      %v246 = vlaneseq
      %v247 = vshrl.u32 %v246, 7
      %v248 = vsub.s32 0, %v247
      %v249 = vrot.slane %v245, %v248
      %v250 = vlaneseq
      %v251 = vshrl.u32 %v250, 7
      %v252 = vsub.s32 1, %v251
      %v253 = vrot.slane %v245, %v252
      %v254 = vlaneseq
      %v255 = vshrl.u32 %v254, 7
      %v256 = vsub.s32 2, %v255
      %v257 = vrot.slane %v245, %v256
      %vm258 = vcmp.eq.s32.totalorder %v229, %v249
      %vm259 = vcmp.eq.s32.totalorder %v229, %v253
      %vm260 = vcmp.eq.s32.totalorder %v229, %v257
      %vm261 = vcmp.eq.s32.totalorder %v230, %v249
      %vm262 = vcmp.eq.s32.totalorder %v230, %v253
      %vm263 = vcmp.eq.s32.totalorder %v230, %v257
      %vm264 = vcmp.eq.s32.totalorder %v231, %v249
      %vm265 = vcmp.eq.s32.totalorder %v231, %v253
      %vm266 = vcmp.eq.s32.totalorder %v231, %v257
      %vm267 = vcmp.eq.s32.totalorder %v232, %v249
      %vm268 = vcmp.eq.s32.totalorder %v232, %v253
      %vm269 = vcmp.eq.s32.totalorder %v232, %v257
      %vm270 = vcmp.eq.s32.totalorder %v233, %v249
      %vm271 = vcmp.eq.s32.totalorder %v233, %v253
      %vm272 = vcmp.eq.s32.totalorder %v233, %v257
      %vm273 = vcmp.eq.s32.totalorder %v234, %v249
      %vm274 = vcmp.eq.s32.totalorder %v234, %v253
      %vm275 = vcmp.eq.s32.totalorder %v234, %v257
      %vm276 = vcmp.eq.s32.totalorder %v235, %v249
      %vm277 = vcmp.eq.s32.totalorder %v235, %v253
      %vm278 = vcmp.eq.s32.totalorder %v235, %v257
      %vm279 = vcmp.eq.s32.totalorder %v236, %v249
      %vm280 = vcmp.eq.s32.totalorder %v236, %v253
      %vm281 = vcmp.eq.s32.totalorder %v236, %v257
      %vm282 = vcmp.eq.s32.totalorder %v237, %v249
      %vm283 = vcmp.eq.s32.totalorder %v237, %v253
      %vm284 = vcmp.eq.s32.totalorder %v237, %v257
      %vm285 = vcmp.eq.s32.totalorder %v238, %v249
      %vm286 = vcmp.eq.s32.totalorder %v238, %v253
      %vm287 = vcmp.eq.s32.totalorder %v238, %v257
      %vm288 = vcmp.eq.s32.totalorder %v239, %v249
      %vm289 = vcmp.eq.s32.totalorder %v239, %v253
      %vm290 = vcmp.eq.s32.totalorder %v239, %v257
      %vm291 = vcmp.eq.s32.totalorder %v240, %v249
      %vm292 = vcmp.eq.s32.totalorder %v240, %v253
      %vm293 = vcmp.eq.s32.totalorder %v240, %v257
      %vm294 = vcmp.eq.s32.totalorder %v241, %v249
      %vm295 = vcmp.eq.s32.totalorder %v241, %v253
      %vm296 = vcmp.eq.s32.totalorder %v241, %v257
      %vm297 = vcmp.eq.s32.totalorder %v242, %v249
      %vm298 = vcmp.eq.s32.totalorder %v242, %v253
      %vm299 = vcmp.eq.s32.totalorder %v242, %v257
      %vm300 = vcmp.eq.s32.totalorder %v243, %v249
      %vm301 = vcmp.eq.s32.totalorder %v243, %v253
      %vm302 = vcmp.eq.s32.totalorder %v243, %v257
      %vm303 = vcmp.eq.s32.totalorder %v244, %v249
      %vm304 = vcmp.eq.s32.totalorder %v244, %v253
      %vm305 = vcmp.eq.s32.totalorder %v244, %v257
      %v306 = vsel %vm258, 1, 0
      %v307 = vsel %vm259, 1, 0
      %v308 = vsel %vm260, 1, 0
      %v309 = vsel %vm261, 1, 0
      %v310 = vsel %vm262, 1, 0
      %v311 = vsel %vm263, 1, 0
      %v312 = vsel %vm264, 1, 0
      %v313 = vsel %vm265, 1, 0
      %v314 = vsel %vm266, 1, 0
      %v315 = vsel %vm267, 1, 0
      %v316 = vsel %vm268, 1, 0
      %v317 = vsel %vm269, 1, 0
      %v318 = vsel %vm270, 1, 0
      %v319 = vsel %vm271, 1, 0
      %v320 = vsel %vm272, 1, 0
      %v321 = vsel %vm273, 1, 0
      %v322 = vsel %vm274, 1, 0
      %v323 = vsel %vm275, 1, 0
      %v324 = vsel %vm276, 1, 0
      %v325 = vsel %vm277, 1, 0
      %v326 = vsel %vm278, 1, 0
      %v327 = vsel %vm279, 1, 0
      %v328 = vsel %vm280, 1, 0
      %v329 = vsel %vm281, 1, 0
      %v330 = vsel %vm282, 1, 0
      %v331 = vsel %vm283, 1, 0
      %v332 = vsel %vm284, 1, 0
      %v333 = vsel %vm285, 1, 0
      %v334 = vsel %vm286, 1, 0
      %v335 = vsel %vm287, 1, 0
      %v336 = vsel %vm288, 1, 0
      %v337 = vsel %vm289, 1, 0
      %v338 = vsel %vm290, 1, 0
      %v339 = vsel %vm291, 1, 0
      %v340 = vsel %vm292, 1, 0
      %v341 = vsel %vm293, 1, 0
      %v342 = vsel %vm294, 1, 0
      %v343 = vsel %vm295, 1, 0
      %v344 = vsel %vm296, 1, 0
      %v345 = vsel %vm297, 1, 0
      %v346 = vsel %vm298, 1, 0
      %v347 = vsel %vm299, 1, 0
      %v348 = vsel %vm300, 1, 0
      %v349 = vsel %vm301, 1, 0
      %v350 = vsel %vm302, 1, 0
      %v351 = vsel %vm303, 1, 0
      %v352 = vsel %vm304, 1, 0
      %v353 = vsel %vm305, 1, 0
      %v354 = vcvt.s32.f32 %v306
      %v355 = vcvt.s32.f32 %v307
      %v356 = vcvt.s32.f32 %v308
      %v357 = vcvt.s32.f32 %v309
      %v358 = vcvt.s32.f32 %v310
      %v359 = vcvt.s32.f32 %v311
      %v360 = vcvt.s32.f32 %v312
      %v361 = vcvt.s32.f32 %v313
      %v362 = vcvt.s32.f32 %v314
      %v363 = vcvt.s32.f32 %v315
      %v364 = vcvt.s32.f32 %v316
      %v365 = vcvt.s32.f32 %v317
      %v366 = vcvt.s32.f32 %v318
      %v367 = vcvt.s32.f32 %v319
      %v368 = vcvt.s32.f32 %v320
      %v369 = vcvt.s32.f32 %v321
      %v370 = vcvt.s32.f32 %v322
      %v371 = vcvt.s32.f32 %v323
      %v372 = vcvt.s32.f32 %v324
      %v373 = vcvt.s32.f32 %v325
      %v374 = vcvt.s32.f32 %v326
      %v375 = vcvt.s32.f32 %v327
      %v376 = vcvt.s32.f32 %v328
      %v377 = vcvt.s32.f32 %v329
      %v378 = vcvt.s32.f32 %v330
      %v379 = vcvt.s32.f32 %v331
      %v380 = vcvt.s32.f32 %v332
      %v381 = vcvt.s32.f32 %v333
      %v382 = vcvt.s32.f32 %v334
      %v383 = vcvt.s32.f32 %v335
      %v384 = vcvt.s32.f32 %v336
      %v385 = vcvt.s32.f32 %v337
      %v386 = vcvt.s32.f32 %v338
      %v387 = vcvt.s32.f32 %v339
      %v388 = vcvt.s32.f32 %v340
      %v389 = vcvt.s32.f32 %v341
      %v390 = vcvt.s32.f32 %v342
      %v391 = vcvt.s32.f32 %v343
      %v392 = vcvt.s32.f32 %v344
      %v393 = vcvt.s32.f32 %v345
      %v394 = vcvt.s32.f32 %v346
      %v395 = vcvt.s32.f32 %v347
      %v396 = vcvt.s32.f32 %v348
      %v397 = vcvt.s32.f32 %v349
      %v398 = vcvt.s32.f32 %v350
      %v399 = vcvt.s32.f32 %v351
      %v400 = vcvt.s32.f32 %v352
      %v401 = vcvt.s32.f32 %v353
      %v402 = vld [vmem:[%s216] sm:$0x7]
      %v403 = vlaneseq
      %v404 = vshrl.u32 %v403, 7
      %v405 = vsub.s32 0, %v404
      %v406 = vrot.slane %v402, %v405
      %v407 = vlaneseq
      %v408 = vshrl.u32 %v407, 7
      %v409 = vsub.s32 1, %v408
      %v410 = vrot.slane %v402, %v409
      %v411 = vlaneseq
      %v412 = vshrl.u32 %v411, 7
      %v413 = vsub.s32 2, %v412
      %v414 = vrot.slane %v402, %v413
      %vm415 = vcmp.eq.s32.totalorder %v229, %v406
      %vm416 = vcmp.eq.s32.totalorder %v229, %v410
      %vm417 = vcmp.eq.s32.totalorder %v229, %v414
      %vm418 = vcmp.eq.s32.totalorder %v230, %v406
      %vm419 = vcmp.eq.s32.totalorder %v230, %v410
      %vm420 = vcmp.eq.s32.totalorder %v230, %v414
      %vm421 = vcmp.eq.s32.totalorder %v231, %v406
      %vm422 = vcmp.eq.s32.totalorder %v231, %v410
      %vm423 = vcmp.eq.s32.totalorder %v231, %v414
      %vm424 = vcmp.eq.s32.totalorder %v232, %v406
      %vm425 = vcmp.eq.s32.totalorder %v232, %v410
      %vm426 = vcmp.eq.s32.totalorder %v232, %v414
      %vm427 = vcmp.eq.s32.totalorder %v233, %v406
      %vm428 = vcmp.eq.s32.totalorder %v233, %v410
      %vm429 = vcmp.eq.s32.totalorder %v233, %v414
      %vm430 = vcmp.eq.s32.totalorder %v234, %v406
      %vm431 = vcmp.eq.s32.totalorder %v234, %v410
      %vm432 = vcmp.eq.s32.totalorder %v234, %v414
      %vm433 = vcmp.eq.s32.totalorder %v235, %v406
      %vm434 = vcmp.eq.s32.totalorder %v235, %v410
      %vm435 = vcmp.eq.s32.totalorder %v235, %v414
      %vm436 = vcmp.eq.s32.totalorder %v236, %v406
      %vm437 = vcmp.eq.s32.totalorder %v236, %v410
      %vm438 = vcmp.eq.s32.totalorder %v236, %v414
      %vm439 = vcmp.eq.s32.totalorder %v237, %v406
      %vm440 = vcmp.eq.s32.totalorder %v237, %v410
      %vm441 = vcmp.eq.s32.totalorder %v237, %v414
      %vm442 = vcmp.eq.s32.totalorder %v238, %v406
      %vm443 = vcmp.eq.s32.totalorder %v238, %v410
      %vm444 = vcmp.eq.s32.totalorder %v238, %v414
      %vm445 = vcmp.eq.s32.totalorder %v239, %v406
      %vm446 = vcmp.eq.s32.totalorder %v239, %v410
      %vm447 = vcmp.eq.s32.totalorder %v239, %v414
      %vm448 = vcmp.eq.s32.totalorder %v240, %v406
      %vm449 = vcmp.eq.s32.totalorder %v240, %v410
      %vm450 = vcmp.eq.s32.totalorder %v240, %v414
      %vm451 = vcmp.eq.s32.totalorder %v241, %v406
      %vm452 = vcmp.eq.s32.totalorder %v241, %v410
      %vm453 = vcmp.eq.s32.totalorder %v241, %v414
      %vm454 = vcmp.eq.s32.totalorder %v242, %v406
      %vm455 = vcmp.eq.s32.totalorder %v242, %v410
      %vm456 = vcmp.eq.s32.totalorder %v242, %v414
      %vm457 = vcmp.eq.s32.totalorder %v243, %v406
      %vm458 = vcmp.eq.s32.totalorder %v243, %v410
      %vm459 = vcmp.eq.s32.totalorder %v243, %v414
      %vm460 = vcmp.eq.s32.totalorder %v244, %v406
      %vm461 = vcmp.eq.s32.totalorder %v244, %v410
      %vm462 = vcmp.eq.s32.totalorder %v244, %v414
      %v463 = vsel %vm415, 1, 0
      %v464 = vsel %vm416, 1, 0
      %v465 = vsel %vm417, 1, 0
      %v466 = vsel %vm418, 1, 0
      %v467 = vsel %vm419, 1, 0
      %v468 = vsel %vm420, 1, 0
      %v469 = vsel %vm421, 1, 0
      %v470 = vsel %vm422, 1, 0
      %v471 = vsel %vm423, 1, 0
      %v472 = vsel %vm424, 1, 0
      %v473 = vsel %vm425, 1, 0
      %v474 = vsel %vm426, 1, 0
      %v475 = vsel %vm427, 1, 0
      %v476 = vsel %vm428, 1, 0
      %v477 = vsel %vm429, 1, 0
      %v478 = vsel %vm430, 1, 0
      %v479 = vsel %vm431, 1, 0
      %v480 = vsel %vm432, 1, 0
      %v481 = vsel %vm433, 1, 0
      %v482 = vsel %vm434, 1, 0
      %v483 = vsel %vm435, 1, 0
      %v484 = vsel %vm436, 1, 0
      %v485 = vsel %vm437, 1, 0
      %v486 = vsel %vm438, 1, 0
      %v487 = vsel %vm439, 1, 0
      %v488 = vsel %vm440, 1, 0
      %v489 = vsel %vm441, 1, 0
      %v490 = vsel %vm442, 1, 0
      %v491 = vsel %vm443, 1, 0
      %v492 = vsel %vm444, 1, 0
      %v493 = vsel %vm445, 1, 0
      %v494 = vsel %vm446, 1, 0
      %v495 = vsel %vm447, 1, 0
      %v496 = vsel %vm448, 1, 0
      %v497 = vsel %vm449, 1, 0
      %v498 = vsel %vm450, 1, 0
      %v499 = vsel %vm451, 1, 0
      %v500 = vsel %vm452, 1, 0
      %v501 = vsel %vm453, 1, 0
      %v502 = vsel %vm454, 1, 0
      %v503 = vsel %vm455, 1, 0
      %v504 = vsel %vm456, 1, 0
      %v505 = vsel %vm457, 1, 0
      %v506 = vsel %vm458, 1, 0
      %v507 = vsel %vm459, 1, 0
      %v508 = vsel %vm460, 1, 0
      %v509 = vsel %vm461, 1, 0
      %v510 = vsel %vm462, 1, 0
      %v511 = vcvt.s32.f32 %v463
      %v512 = vcvt.s32.f32 %v464
      %v513 = vcvt.s32.f32 %v465
      %v514 = vcvt.s32.f32 %v466
      %v515 = vcvt.s32.f32 %v467
      %v516 = vcvt.s32.f32 %v468
      %v517 = vcvt.s32.f32 %v469
      %v518 = vcvt.s32.f32 %v470
      %v519 = vcvt.s32.f32 %v471
      %v520 = vcvt.s32.f32 %v472
      %v521 = vcvt.s32.f32 %v473
      %v522 = vcvt.s32.f32 %v474
      %v523 = vcvt.s32.f32 %v475
      %v524 = vcvt.s32.f32 %v476
      %v525 = vcvt.s32.f32 %v477
      %v526 = vcvt.s32.f32 %v478
      %v527 = vcvt.s32.f32 %v479
      %v528 = vcvt.s32.f32 %v480
      %v529 = vcvt.s32.f32 %v481
      %v530 = vcvt.s32.f32 %v482
      %v531 = vcvt.s32.f32 %v483
      %v532 = vcvt.s32.f32 %v484
      %v533 = vcvt.s32.f32 %v485
      %v534 = vcvt.s32.f32 %v486
      %v535 = vcvt.s32.f32 %v487
      %v536 = vcvt.s32.f32 %v488
      %v537 = vcvt.s32.f32 %v489
      %v538 = vcvt.s32.f32 %v490
      %v539 = vcvt.s32.f32 %v491
      %v540 = vcvt.s32.f32 %v492
      %v541 = vcvt.s32.f32 %v493
      %v542 = vcvt.s32.f32 %v494
      %v543 = vcvt.s32.f32 %v495
      %v544 = vcvt.s32.f32 %v496
      %v545 = vcvt.s32.f32 %v497
      %v546 = vcvt.s32.f32 %v498
      %v547 = vcvt.s32.f32 %v499
      %v548 = vcvt.s32.f32 %v500
      %v549 = vcvt.s32.f32 %v501
      %v550 = vcvt.s32.f32 %v502
      %v551 = vcvt.s32.f32 %v503
      %v552 = vcvt.s32.f32 %v504
      %v553 = vcvt.s32.f32 %v505
      %v554 = vcvt.s32.f32 %v506
      %v555 = vcvt.s32.f32 %v507
      %v556 = vcvt.s32.f32 %v508
      %v557 = vcvt.s32.f32 %v509
      %v558 = vcvt.s32.f32 %v510
      %v559 = vsub.f32 %v354, %v511
      %v560 = vsub.f32 %v355, %v512
      %v561 = vsub.f32 %v356, %v513
      %v562 = vsub.f32 %v357, %v514
      %v563 = vsub.f32 %v358, %v515
      %v564 = vsub.f32 %v359, %v516
      %v565 = vsub.f32 %v360, %v517
      %v566 = vsub.f32 %v361, %v518
      %v567 = vsub.f32 %v362, %v519
      %v568 = vsub.f32 %v363, %v520
      %v569 = vsub.f32 %v364, %v521
      %v570 = vsub.f32 %v365, %v522
      %v571 = vsub.f32 %v366, %v523
      %v572 = vsub.f32 %v367, %v524
      %v573 = vsub.f32 %v368, %v525
      %v574 = vsub.f32 %v369, %v526
      %v575 = vsub.f32 %v370, %v527
      %v576 = vsub.f32 %v371, %v528
      %v577 = vsub.f32 %v372, %v529
      %v578 = vsub.f32 %v373, %v530
      %v579 = vsub.f32 %v374, %v531
      %v580 = vsub.f32 %v375, %v532
      %v581 = vsub.f32 %v376, %v533
      %v582 = vsub.f32 %v377, %v534
      %v583 = vsub.f32 %v378, %v535
      %v584 = vsub.f32 %v379, %v536
      %v585 = vsub.f32 %v380, %v537
      %v586 = vsub.f32 %v381, %v538
      %v587 = vsub.f32 %v382, %v539
      %v588 = vsub.f32 %v383, %v540
      %v589 = vsub.f32 %v384, %v541
      %v590 = vsub.f32 %v385, %v542
      %v591 = vsub.f32 %v386, %v543
      %v592 = vsub.f32 %v387, %v544
      %v593 = vsub.f32 %v388, %v545
      %v594 = vsub.f32 %v389, %v546
      %v595 = vsub.f32 %v390, %v547
      %v596 = vsub.f32 %v391, %v548
      %v597 = vsub.f32 %v392, %v549
      %v598 = vsub.f32 %v393, %v550
      %v599 = vsub.f32 %v394, %v551
      %v600 = vsub.f32 %v395, %v552
      %v601 = vsub.f32 %v396, %v553
      %v602 = vsub.f32 %v397, %v554
      %v603 = vsub.f32 %v398, %v555
      %v604 = vsub.f32 %v399, %v556
      %v605 = vsub.f32 %v400, %v557
      %v606 = vsub.f32 %v401, %v558
      %v607 = vld [vmem:[%s2] sm:$0xff]
      %608 = vmatprep.subr.mxu0 %v560
      %609 = vmatpush1.msra.mxu0 %v559
      %610 = vmatprep.subr.mxu0 %v563
      %611 = vmatpush1.msra.mxu0 %v562
      %612 = vmatprep.subr.mxu0 %v566
      %613 = vmatpush1.msra.mxu0 %v565
      %614 = vmatprep.subr.mxu0 %v569
      %615 = vmatpush1.msra.mxu0 %v568
      %616 = vmatprep.subr.mxu0 %v572
      %617 = vmatpush1.msra.mxu0 %v571
      %618 = vmatprep.subr.mxu0 %v575
      %619 = vmatpush1.msra.mxu0 %v574
      %620 = vmatprep.subr.mxu0 %v578
      %621 = vmatpush1.msra.mxu0 %v577
      %622 = vmatprep.subr.mxu0 %v581
      %623 = vmatpush1.msra.mxu0 %v580
      %624 = vmatprep.subr.mxu0 %v584
      %625 = vmatpush1.msra.mxu0 %v583
      %626 = vmatprep.subr.mxu0 %v587
      %627 = vmatpush1.msra.mxu0 %v586
      %628 = vmatprep.subr.mxu0 %v590
      %629 = vmatpush1.msra.mxu0 %v589
      %630 = vmatprep.subr.mxu0 %v593
      %631 = vmatpush1.msra.mxu0 %v592
      %632 = vmatprep.subr.mxu0 %v596
      %633 = vmatpush1.msra.mxu0 %v595
      %634 = vmatprep.subr.mxu0 %v599
      %635 = vmatpush1.msra.mxu0 %v598
      %636 = vmatprep.subr.mxu0 %v602
      %637 = vmatpush1.msra.mxu0 %v601
      %638 = vmatprep.subr.mxu0 %v605
      %639 = vmatpush1.msra.mxu0 %v604
      %640 = vmatprep.subr.mxu0 0.0
      %641 = vmatpush1.msra.mxu0 0.0
      %642 = vmatprep.subr.mxu0 0.0
      %643 = vmatpush1.msra.mxu0 0.0
      %644 = vmatprep.subr.mxu0 0.0
      %645 = vmatpush1.msra.mxu0 0.0
      %646 = vmatprep.subr.mxu0 0.0
      %647 = vmatpush1.msra.mxu0 0.0
      %648 = vmatprep.subr.mxu0 0.0
      %649 = vmatpush1.msra.mxu0 0.0
      %650 = vmatprep.subr.mxu0 0.0
      %651 = vmatpush1.msra.mxu0 0.0
      %652 = vmatprep.subr.mxu0 0.0
      %653 = vmatpush1.msra.mxu0 0.0
      %654 = vmatprep.subr.mxu0 0.0
      %655 = vmatpush1.msra.mxu0 0.0
      %656 = vmatprep.subr.mxu0 0.0
      %657 = vmatpush1.msra.mxu0 0.0
      %658 = vmatprep.subr.mxu0 0.0
      %659 = vmatpush1.msra.mxu0 0.0
      %660 = vmatprep.subr.mxu0 0.0
      %661 = vmatpush1.msra.mxu0 0.0
      %662 = vmatprep.subr.mxu0 0.0
      %663 = vmatpush1.msra.mxu0 0.0
      %664 = vmatprep.subr.mxu0 0.0
      %665 = vmatpush1.msra.mxu0 0.0
      %666 = vmatprep.subr.mxu0 0.0
      %667 = vmatpush1.msra.mxu0 0.0
      %668 = vmatprep.subr.mxu0 0.0
      %669 = vmatpush1.msra.mxu0 0.0
      %670 = vmatprep.subr.mxu0 0.0
      %671 = vmatpush1.msra.mxu0 0.0
      %672 = vmatprep.mubr.f32.mxu0 0.0
      %673 = vmatmul.mubr.f32.gmra.mrb[0].mxu0 %v607
      %v674 = vpop.f32.mrb[0].mxu0
      %v675 = vadd.f32 0.0, %v674
      %v676 = vpop.f32.mrb[0].mxu0
      %v677 = vadd.f32 0.0, %v676
      %678 = vdwg.mxu0
      %679 = vmatprep.subr.mxu0 0.0
      %680 = vmatpush1.msra.mxu0 %v561
      %681 = vmatprep.subr.mxu0 0.0
      %682 = vmatpush1.msra.mxu0 %v564
      %683 = vmatprep.subr.mxu0 0.0
      %684 = vmatpush1.msra.mxu0 %v567
      %685 = vmatprep.subr.mxu0 0.0
      %686 = vmatpush1.msra.mxu0 %v570
      %687 = vmatprep.subr.mxu0 0.0
      %688 = vmatpush1.msra.mxu0 %v573
      %689 = vmatprep.subr.mxu0 0.0
      %690 = vmatpush1.msra.mxu0 %v576
      %691 = vmatprep.subr.mxu0 0.0
      %692 = vmatpush1.msra.mxu0 %v579
      %693 = vmatprep.subr.mxu0 0.0
      %694 = vmatpush1.msra.mxu0 %v582
      %695 = vmatprep.subr.mxu0 0.0
      %696 = vmatpush1.msra.mxu0 %v585
      %697 = vmatprep.subr.mxu0 0.0
      %698 = vmatpush1.msra.mxu0 %v588
      %699 = vmatprep.subr.mxu0 0.0
      %700 = vmatpush1.msra.mxu0 %v591
      %701 = vmatprep.subr.mxu0 0.0
      %702 = vmatpush1.msra.mxu0 %v594
      %703 = vmatprep.subr.mxu0 0.0
      %704 = vmatpush1.msra.mxu0 %v597
      %705 = vmatprep.subr.mxu0 0.0
      %706 = vmatpush1.msra.mxu0 %v600
      %707 = vmatprep.subr.mxu0 0.0
      %708 = vmatpush1.msra.mxu0 %v603
      %709 = vmatprep.subr.mxu0 0.0
      %710 = vmatpush1.msra.mxu0 %v606
      %711 = vmatprep.subr.mxu0 0.0
      %712 = vmatpush1.msra.mxu0 0.0
      %713 = vmatprep.subr.mxu0 0.0
      %714 = vmatpush1.msra.mxu0 0.0
      %715 = vmatprep.subr.mxu0 0.0
      %716 = vmatpush1.msra.mxu0 0.0
      %717 = vmatprep.subr.mxu0 0.0
      %718 = vmatpush1.msra.mxu0 0.0
      %719 = vmatprep.subr.mxu0 0.0
      %720 = vmatpush1.msra.mxu0 0.0
      %721 = vmatprep.subr.mxu0 0.0
      %722 = vmatpush1.msra.mxu0 0.0
      %723 = vmatprep.subr.mxu0 0.0
      %724 = vmatpush1.msra.mxu0 0.0
      %725 = vmatprep.subr.mxu0 0.0
      %726 = vmatpush1.msra.mxu0 0.0
      %727 = vmatprep.subr.mxu0 0.0
      %728 = vmatpush1.msra.mxu0 0.0
      %729 = vmatprep.subr.mxu0 0.0
      %730 = vmatpush1.msra.mxu0 0.0
      %731 = vmatprep.subr.mxu0 0.0
      %732 = vmatpush1.msra.mxu0 0.0
      %733 = vmatprep.subr.mxu0 0.0
      %734 = vmatpush1.msra.mxu0 0.0
      %735 = vmatprep.subr.mxu0 0.0
      %736 = vmatpush1.msra.mxu0 0.0
      %737 = vmatprep.subr.mxu0 0.0
      %738 = vmatpush1.msra.mxu0 0.0
      %739 = vmatprep.subr.mxu0 0.0
      %740 = vmatpush1.msra.mxu0 0.0
      %741 = vmatprep.subr.mxu0 0.0
      %742 = vmatpush1.msra.mxu0 0.0
      %743 = vmatprep.mubr.f32.mxu0 0.0
      %744 = vmatmul.mubr.f32.gmra.mrb[0].mxu0 %v607
      %v745 = vpop.f32.mrb[0].mxu0
      %v746 = vadd.f32 0.0, %v745
      %v747 = vpop.f32.mrb[0].mxu0
      %748 = vdwg.mxu0
      %v751 = vcombine.low %v675, %v677
      %753 = vst [vmem:[%s222] sm:$0x77] %v751
      %754 = vst [vmem:[%s222 + $0x8] sm:$0x7] %v746
      %v755 = vand.u32 2147483647, %v675
      %v756 = vand.u32 2147483647, %v677
      %v757 = vand.u32 2147483647, %v746
      %v758 = vmax.f32 %v755, %v756
      %v759 = vmax.f32 %v758, %v757
      %760 = vmax.xlane.f32.xlu0 %v759
      %v761 = vpop.xlane.xlu0 %760
      %762 = vst [vmem:[%s227] sm:$0xff] %v761
      %s763 = smul.u32 3, %s16
      %p764 = scmp.lt.s32.totalorder %s763, 5
      %s765 = scalar_select %p764, %s763, 5
      %s766 = smul.addr %s765, 4
      %s767 = scalar_lea.vmem %s3, %s766
      %p768 = scmp.lt.s32.totalorder %s16, 1
      %s769 = scalar_select %p768, %s16, 1
      %s770 = smul.addr %s769, 8
      %s771 = scalar_lea.vmem %s4, %s770
      // Predicated region
      $region33: #{_cartesian_impl.1} parent=31 // pred_check
        %p772 = pneg %p107
      $region34: #{_cartesian_impl.1} parent=31 // pred_check_branch
        %774 = sbr.rel (%p772) target = $region36
      $region35: #{_cartesian_impl.1} parent=31 // pred_region
        %s775 = smul.u32 3, %s16
      $region36: #{_cartesian_impl.1} parent=31 // pred_fallthru
        _
      // Predicated region
      $region37: #{_cartesian_impl.1} parent=31 // pred_check
        %p776 = pneg %p133
      $region38: #{_cartesian_impl.1} parent=31 // pred_check_branch
        %778 = sbr.rel (%p776) target = $region40
      $region39: #{_cartesian_impl.1} parent=31 // pred_region
        _
      $region40: #{_cartesian_impl.1} parent=31 // pred_fallthru
        _
    $region32: #{_cartesian_impl.1} parent=5 // pred_fallthru
      _
    %p779 = scmp.le.s32.totalorder 2, %s11
    // Predicated region
    $region41: #{_cartesian_impl.1} parent=5 // pred_check
      %p780 = pneg %p779
    $region42: #{_cartesian_impl.1} parent=5 // pred_check_branch
      %782 = sbr.rel (%p780) target = $region44
    $region43: #{_cartesian_impl.1} parent=5 // pred_region
      %s783 = ssub.s32 %s11, 2
      // Predicated region
      $region45: #{_cartesian_impl.1} parent=43 // pred_check
        %p784 = pneg %p113
      $region46: #{_cartesian_impl.1} parent=43 // pred_check_branch
        %786 = sbr.rel (%p784) target = $region48
      $region47: #{_cartesian_impl.1} parent=43 // pred_region
        %s787 = smul.u32 3, %s17
        %p788 = scmp.lt.s32.totalorder %s787, 5
        %s789 = scalar_select %p788, %s787, 5
        %s790 = smul.addr %s789, 4
        %s791 = scalar_lea.vmem %s3, %s790
      $region48: #{_cartesian_impl.1} parent=43 // pred_fallthru
        _
      // Predicated region
      $region49: #{_cartesian_impl.1} parent=43 // pred_check
        %p792 = pneg %p139
      $region50: #{_cartesian_impl.1} parent=43 // pred_check_branch
        %794 = sbr.rel (%p792) target = $region52
      $region51: #{_cartesian_impl.1} parent=43 // pred_region
        %p795 = scmp.lt.s32.totalorder %s17, 1
        %s796 = scalar_select %p795, %s17, 1
        %s797 = smul.addr %s796, 8
        %s798 = scalar_lea.vmem %s4, %s797
      $region52: #{_cartesian_impl.1} parent=43 // pred_fallthru
        _
    $region44: #{_cartesian_impl.1} parent=5 // pred_fallthru
      _
  $region6: #{_cartesian_impl.1} parent=0 // loop_footer
    %s15 = sadd.s32 1, %s11
  $region7: #{_cartesian_impl.1} parent=0 // loop_footer_branch
    %10 = sbr.rel target = $region3
  $region8: #{_cartesian_impl.1} parent=0 // loop_exit
    _

</llo_original>
